<compile_context>
chip_gen: v5e
topology: v5e:2x2
jax: 0.10.0
libtpu: 0.0.40
codegen_flags: <defaults>
</compile_context>

<pallas_src>
import jax
import jax.numpy as jnp
import numpy as np
from jax.experimental import pallas as pl
from jax.experimental.pallas import tpu as pltpu

W_SIZE = 3  # opt.cnn_window_size; padding=(1,0) keeps output time length == T only for W=3


def pcnn_kernel(x_ref, w_ref, b_ref, m_ref, o_ref):
    # x_ref: (TB, T+2, E)  bf16  time-padded embeddings for TB sentences
    # w_ref: (W, E, Hp)    bf16  conv weight, one (E, Hp) slab per window offset
    # b_ref: (1, Hp)       f32   conv bias (Hp = H padded up to a multiple of 128)
    # m_ref: (TB, T, 3)    f32   additive piece masks (100 * one_hot(piece))
    # o_ref: (TB, 3, Hp)   f32   per-piece pooled features (ReLU applied)
    tb, tp2, e = x_ref.shape
    t = tp2 - 2
    n_w = w_ref.shape[0]
    hp = o_ref.shape[-1]

    # Upcast once in VMEM: HBM traffic stays bf16, in-kernel layouts stay f32
    # (most mature relayout path; also required for v5e's f32-only vector units).
    x = x_ref[...].astype(jnp.float32)            # (TB, T+2, E)
    w = w_ref[...].astype(jnp.float32)            # (W, E, Hp)

    # conv[s, t] = sum_w x_pad[s, t+w] @ W_w  — W shifted 2-D MXU matmuls over all
    # TB*T rows at once (f32 accumulate).
    conv = jnp.dot(x[:, 0:t, :].reshape(tb * t, e), w[0],
                   preferred_element_type=jnp.float32)          # (TB*T, Hp)
    for wi in range(1, n_w):                                    # static unroll, W == 3
        xs = x[:, wi:wi + t, :].reshape(tb * t, e)
        conv = conv + jnp.dot(xs, w[wi], preferred_element_type=jnp.float32)
    conv = conv.reshape(tb, t, hp)                              # (TB, T, Hp)

    b = b_ref[...]                                              # (1, Hp)
    m = m_ref[...]                                              # (TB, T, 3)
    for p in range(3):                                          # piece-wise masked max-pool
        piece = conv + m[:, :, p:p + 1]                         # (TB, T, Hp)
        pooled = jnp.max(piece, axis=1) + b - 100.0             # bias commutes with the max
        o_ref[:, p, :] = jnp.maximum(pooled, 0.0)               # ReLU, lane-dense store


def pcnn_forward(emb, masks, weight, bias, *, tb=None):
    """emb: [B, T, E] f32, masks: [B, T, 3] f32, weight: [H, 1, W, E] f32, bias: [H] f32."""
    B, T, E = emb.shape
    H, _, W, Ew = weight.shape
    assert W == W_SIZE and Ew == E  # padding=(1,0) preserves the time length only for W == 3
    # TODO(synk): generalize to other cnn_window_size values (needs different time padding).

    Hp = pl.cdiv(H, 128) * 128                      # lane-dense output / full MXU N dim

    # Sentences per grid step: target >= 512 matmul rows, keep the tile sublane-aligned.
    if tb is None:
        tb = min(max(B, 1), max(1, 512 // T))
    tb = max(8, pl.cdiv(tb, 8) * 8)
    nb = pl.cdiv(B, tb)
    Bp = nb * tb

    # bf16 HBM storage halves the dominant (activation) DMA traffic.
    emb_p = jnp.pad(emb, ((0, Bp - B), (1, 1), (0, 0))).astype(jnp.bfloat16)     # (Bp, T+2, E)
    masks_p = jnp.pad(masks, ((0, Bp - B), (0, 0), (0, 0))).astype(jnp.float32)  # (Bp, T, 3)
    # (H, 1, W, E) -> (W, E, Hp): one MXU-ready slab per window offset, H zero-padded.
    w_stack = jnp.transpose(weight.reshape(H, W, E), (1, 2, 0))                  # (W, E, H)
    w_stack = jnp.pad(w_stack, ((0, 0), (0, 0), (0, Hp - H))).astype(jnp.bfloat16)
    b_p = jnp.pad(bias, (0, Hp - H)).reshape(1, Hp).astype(jnp.float32)

    out = pl.pallas_call(
        pcnn_kernel,
        out_shape=jax.ShapeDtypeStruct((Bp, 3, Hp), jnp.float32),
        grid_spec=pltpu.PrefetchScalarGridSpec(
            num_scalar_prefetch=0,
            grid=(nb,),
            in_specs=[
                pl.BlockSpec((tb, T + 2, E), lambda i: (i, 0, 0)),
                pl.BlockSpec((W, E, Hp), lambda i: (0, 0, 0)),
                pl.BlockSpec((1, Hp), lambda i: (0, 0)),
                pl.BlockSpec((tb, T, 3), lambda i: (i, 0, 0)),
            ],
            out_specs=pl.BlockSpec((tb, 3, Hp), lambda i: (i, 0, 0)),
        ),
        # Per-step VMEM is a few hundred KiB even at tb=64, well under every chip's
        # default scoped limit (v7x: 32 of 64 MiB), so no vmem_limit_bytes override
        # is needed; "parallel" lets the batched grid axis shard across v7x's 2 TCs.
        compiler_params=pltpu.CompilerParams(dimension_semantics=("parallel",)),
    )(emb_p, w_stack, b_p, masks_p)

    # torch: max over time gives [B, H, 3]; .view(-1, H*3) flattens h-major, piece-minor.
    feat = jnp.transpose(out[:B, :, :H], (0, 2, 1)).reshape(B, 3 * H)
    # nn.Dropout(opt.dropout_keep) is identity at inference (deterministic eval semantics).
    return feat


def reference(emb, masks, weight, bias):
    """Pure-JAX reference reproducing the torch forward (NCHW conv).

    Inputs are rounded through bf16 exactly like the kernel's HBM storage so the
    comparison stays tight; all arithmetic is f32 as in the torch module.
    """
    x = emb.astype(jnp.bfloat16).astype(jnp.float32)[:, None, :, :]          # (B, 1, T, E)
    w = weight.astype(jnp.bfloat16).astype(jnp.float32)
    out = jax.lax.conv_general_dilated(
        x, w, window_strides=(1, 1), padding=((1, 1), (0, 0)),
        dimension_numbers=("NCHW", "OIHW", "NCHW"))                          # (B, H, T, 1)
    out = out + bias[None, :, None, None]
    s = out + masks[:, None, :, :]                                           # (B, H, T, 3)
    pooled = jnp.max(s, axis=2) - 100.0                                      # (B, H, 3)
    return jax.nn.relu(pooled.reshape(emb.shape[0], -1))                     # (B, H*3)


if __name__ == "__main__":
    # Small, shape-consistent config: opt.word_vec_size=24, opt.position_size=4,
    # opt.hidden_size=32, opt.cnn_window_size=3.
    B, T = 2, 8
    word_vec_size, position_size = 24, 4
    E = word_vec_size + 2 * position_size      # 32
    H = 32

    key = jax.random.PRNGKey(0)
    k_emb, k_w, k_b = jax.random.split(key, 3)
    emb = jax.random.normal(k_emb, (B, T, E), dtype=jnp.float32)
    weight = jax.random.normal(k_w, (H, 1, W_SIZE, E), dtype=jnp.float32) * 0.1
    bias = jax.random.normal(k_b, (H,), dtype=jnp.float32) * 0.1

    # Piece-wise masks: each token belongs to piece 0/1/2 (thirds of the sentence),
    # encoded as 100 * one_hot(piece) exactly like standard PCNN mask construction.
    piece_id = np.minimum(np.arange(T) * 3 // T, 2)
    masks_np = (np.eye(3, dtype=np.float32)[piece_id] * 100.0)[None].repeat(B, axis=0)
    masks = jnp.asarray(masks_np)                                            # (B, T, 3)

    out = jax.block_until_ready(pcnn_forward(emb, masks, weight, bias))
    ref = reference(emb, masks, weight, bias)
    # Residual error is dominated by the model's own +100/-100 mask trick and the
    # different (but equivalent) summation order (~1e-5); 1e-3 leaves ample margin.
    np.testing.assert_allclose(np.asarray(out), np.asarray(ref), rtol=1e-3, atol=1e-3)
    print("KERNEL_OK")
</pallas_src>

<mosaic_0001>
module attributes {stable_mosaic.version = 11 : i64} {
  func.func @pcnn_kernel(%arg0: i32, %arg1: memref<8x10x32xbf16, #tpu.memory_space<vmem>>, %arg2: memref<3x32x128xbf16, #tpu.memory_space<vmem>>, %arg3: memref<1x128xf32, #tpu.memory_space<vmem>>, %arg4: memref<8x8x3xf32, #tpu.memory_space<vmem>>, %arg5: memref<8x3x128xf32, #tpu.memory_space<vmem>>) attributes {dimension_semantics = [#tpu.dimension_semantics<parallel>], iteration_bounds = array<i64: 1>, scalar_prefetch = 0 : i64, scratch_operands = 0 : i64, tpu.core_type = #tpu.core_type<tc>, window_params = [{transform_indices = @transform_0, window_bounds = array<i64: 8, 10, 32>}, {pipeline_mode = #tpu.pipeline_mode<synchronous>, transform_indices = @transform_1, window_bounds = array<i64: 3, 32, 128>}, {pipeline_mode = #tpu.pipeline_mode<synchronous>, transform_indices = @transform_2, window_bounds = array<i64: 1, 128>}, {transform_indices = @transform_3, window_bounds = array<i64: 8, 8, 3>}, {transform_indices = @transform_4, window_bounds = array<i64: 8, 3, 128>}]} {
    %c0 = arith.constant 0 : index
    %c0_0 = arith.constant 0 : index
    %c0_1 = arith.constant 0 : index
    %0 = vector.load %arg1[%c0, %c0_0, %c0_1] : memref<8x10x32xbf16, #tpu.memory_space<vmem>>, vector<8x10x32xbf16>
    %1 = arith.extf %0 : vector<8x10x32xbf16> to vector<8x10x32xf32>
    %c0_2 = arith.constant 0 : index
    %c0_3 = arith.constant 0 : index
    %c0_4 = arith.constant 0 : index
    %2 = vector.load %arg2[%c0_2, %c0_3, %c0_4] : memref<3x32x128xbf16, #tpu.memory_space<vmem>>, vector<3x32x128xbf16>
    %3 = arith.extf %2 : vector<3x32x128xbf16> to vector<3x32x128xf32>
    %4 = vector.extract_strided_slice %1 {offsets = [0, 0, 0], sizes = [8, 8, 32], strides = [1, 1, 1]} : vector<8x10x32xf32> to vector<8x8x32xf32>
    %5 = vector.shape_cast %4 : vector<8x8x32xf32> to vector<64x32xf32>
    %6 = vector.extract_strided_slice %3 {offsets = [0, 0, 0], sizes = [1, 32, 128], strides = [1, 1, 1]} : vector<3x32x128xf32> to vector<1x32x128xf32>
    %7 = vector.shape_cast %6 : vector<1x32x128xf32> to vector<32x128xf32>
    %cst = arith.constant dense<0.000000e+00> : vector<64x128xf32>
    %8 = tpu.matmul %5, %7, %cst {dimension_numbers = #tpu.dot_dimension_numbers<[1], [0], [0], [1], [0, 0, 1, 1], [], []>} : vector<64x32xf32>, vector<32x128xf32>, vector<64x128xf32> -> vector<64x128xf32>
    %9 = vector.extract_strided_slice %1 {offsets = [0, 1, 0], sizes = [8, 8, 32], strides = [1, 1, 1]} : vector<8x10x32xf32> to vector<8x8x32xf32>
    %10 = vector.shape_cast %9 : vector<8x8x32xf32> to vector<64x32xf32>
    %11 = vector.extract_strided_slice %3 {offsets = [1, 0, 0], sizes = [1, 32, 128], strides = [1, 1, 1]} : vector<3x32x128xf32> to vector<1x32x128xf32>
    %12 = vector.shape_cast %11 : vector<1x32x128xf32> to vector<32x128xf32>
    %cst_5 = arith.constant dense<0.000000e+00> : vector<64x128xf32>
    %13 = tpu.matmul %10, %12, %cst_5 {dimension_numbers = #tpu.dot_dimension_numbers<[1], [0], [0], [1], [0, 0, 1, 1], [], []>} : vector<64x32xf32>, vector<32x128xf32>, vector<64x128xf32> -> vector<64x128xf32>
    %14 = arith.addf %8, %13 : vector<64x128xf32>
    %15 = vector.extract_strided_slice %1 {offsets = [0, 2, 0], sizes = [8, 8, 32], strides = [1, 1, 1]} : vector<8x10x32xf32> to vector<8x8x32xf32>
    %16 = vector.shape_cast %15 : vector<8x8x32xf32> to vector<64x32xf32>
    %17 = vector.extract_strided_slice %3 {offsets = [2, 0, 0], sizes = [1, 32, 128], strides = [1, 1, 1]} : vector<3x32x128xf32> to vector<1x32x128xf32>
    %18 = vector.shape_cast %17 : vector<1x32x128xf32> to vector<32x128xf32>
    %cst_6 = arith.constant dense<0.000000e+00> : vector<64x128xf32>
    %19 = tpu.matmul %16, %18, %cst_6 {dimension_numbers = #tpu.dot_dimension_numbers<[1], [0], [0], [1], [0, 0, 1, 1], [], []>} : vector<64x32xf32>, vector<32x128xf32>, vector<64x128xf32> -> vector<64x128xf32>
    %20 = arith.addf %14, %19 : vector<64x128xf32>
    %21 = vector.shape_cast %20 : vector<64x128xf32> to vector<8x8x128xf32>
    %c0_7 = arith.constant 0 : index
    %c0_8 = arith.constant 0 : index
    %22 = vector.load %arg3[%c0_7, %c0_8] : memref<1x128xf32, #tpu.memory_space<vmem>>, vector<1x128xf32>
    %c0_9 = arith.constant 0 : index
    %c0_10 = arith.constant 0 : index
    %c0_11 = arith.constant 0 : index
    %23 = vector.load %arg4[%c0_9, %c0_10, %c0_11] : memref<8x8x3xf32, #tpu.memory_space<vmem>>, vector<8x8x3xf32>
    %24 = vector.extract_strided_slice %23 {offsets = [0, 0, 0], sizes = [8, 8, 1], strides = [1, 1, 1]} : vector<8x8x3xf32> to vector<8x8x1xf32>
    %25 = vector.broadcast %24 : vector<8x8x1xf32> to vector<8x8x128xf32>
    %26 = arith.addf %21, %25 : vector<8x8x128xf32>
    %cst_12 = arith.constant dense<0xFF800000> : vector<8x128xf32>
    %27 = vector.multi_reduction <maximumf>, %26, %cst_12 [1] : vector<8x8x128xf32> to vector<8x128xf32>
    %28 = vector.broadcast %22 : vector<1x128xf32> to vector<8x128xf32>
    %29 = arith.addf %27, %28 : vector<8x128xf32>
    %cst_13 = arith.constant 1.000000e+02 : f32
    %30 = vector.broadcast %cst_13 : f32 to vector<8x128xf32>
    %31 = arith.subf %29, %30 : vector<8x128xf32>
    %cst_14 = arith.constant 0.000000e+00 : f32
    %32 = vector.broadcast %cst_14 : f32 to vector<8x128xf32>
    %33 = arith.maximumf %31, %32 : vector<8x128xf32>
    %c0_15 = arith.constant 0 : index
    %c0_16 = arith.constant 0 : index
    %c0_17 = arith.constant 0 : index
    %34 = vector.load %arg5[%c0_15, %c0_16, %c0_17] : memref<8x3x128xf32, #tpu.memory_space<vmem>>, vector<8x1x128xf32>
    %35 = vector.shape_cast %34 : vector<8x1x128xf32> to vector<8x128xf32>
    %36 = vector.shape_cast %33 : vector<8x128xf32> to vector<8x1x128xf32>
    tpu.vector_store %arg5[%c0_15, %c0_16, %c0_17], %36 {strides = array<i32>} : memref<8x3x128xf32, #tpu.memory_space<vmem>>, vector<8x1x128xf32>,
    %37 = vector.extract_strided_slice %23 {offsets = [0, 0, 1], sizes = [8, 8, 1], strides = [1, 1, 1]} : vector<8x8x3xf32> to vector<8x8x1xf32>
    %38 = vector.broadcast %37 : vector<8x8x1xf32> to vector<8x8x128xf32>
    %39 = arith.addf %21, %38 : vector<8x8x128xf32>
    %cst_18 = arith.constant dense<0xFF800000> : vector<8x128xf32>
    %40 = vector.multi_reduction <maximumf>, %39, %cst_18 [1] : vector<8x8x128xf32> to vector<8x128xf32>
    %41 = vector.broadcast %22 : vector<1x128xf32> to vector<8x128xf32>
    %42 = arith.addf %40, %41 : vector<8x128xf32>
    %cst_19 = arith.constant 1.000000e+02 : f32
    %43 = vector.broadcast %cst_19 : f32 to vector<8x128xf32>
    %44 = arith.subf %42, %43 : vector<8x128xf32>
    %cst_20 = arith.constant 0.000000e+00 : f32
    %45 = vector.broadcast %cst_20 : f32 to vector<8x128xf32>
    %46 = arith.maximumf %44, %45 : vector<8x128xf32>
    %c0_21 = arith.constant 0 : index
    %c1 = arith.constant 1 : index
    %c0_22 = arith.constant 0 : index
    %47 = vector.load %arg5[%c0_21, %c1, %c0_22] : memref<8x3x128xf32, #tpu.memory_space<vmem>>, vector<8x1x128xf32>
    %48 = vector.shape_cast %47 : vector<8x1x128xf32> to vector<8x128xf32>
    %49 = vector.shape_cast %46 : vector<8x128xf32> to vector<8x1x128xf32>
    tpu.vector_store %arg5[%c0_21, %c1, %c0_22], %49 {strides = array<i32>} : memref<8x3x128xf32, #tpu.memory_space<vmem>>, vector<8x1x128xf32>,
    %50 = vector.extract_strided_slice %23 {offsets = [0, 0, 2], sizes = [8, 8, 1], strides = [1, 1, 1]} : vector<8x8x3xf32> to vector<8x8x1xf32>
    %51 = vector.broadcast %50 : vector<8x8x1xf32> to vector<8x8x128xf32>
    %52 = arith.addf %21, %51 : vector<8x8x128xf32>
    %cst_23 = arith.constant dense<0xFF800000> : vector<8x128xf32>
    %53 = vector.multi_reduction <maximumf>, %52, %cst_23 [1] : vector<8x8x128xf32> to vector<8x128xf32>
    %54 = vector.broadcast %22 : vector<1x128xf32> to vector<8x128xf32>
    %55 = arith.addf %53, %54 : vector<8x128xf32>
    %cst_24 = arith.constant 1.000000e+02 : f32
    %56 = vector.broadcast %cst_24 : f32 to vector<8x128xf32>
    %57 = arith.subf %55, %56 : vector<8x128xf32>
    %cst_25 = arith.constant 0.000000e+00 : f32
    %58 = vector.broadcast %cst_25 : f32 to vector<8x128xf32>
    %59 = arith.maximumf %57, %58 : vector<8x128xf32>
    %c0_26 = arith.constant 0 : index
    %c2 = arith.constant 2 : index
    %c0_27 = arith.constant 0 : index
    %60 = vector.load %arg5[%c0_26, %c2, %c0_27] : memref<8x3x128xf32, #tpu.memory_space<vmem>>, vector<8x1x128xf32>
    %61 = vector.shape_cast %60 : vector<8x1x128xf32> to vector<8x128xf32>
    %62 = vector.shape_cast %59 : vector<8x128xf32> to vector<8x1x128xf32>
    tpu.vector_store %arg5[%c0_26, %c2, %c0_27], %62 {strides = array<i32>} : memref<8x3x128xf32, #tpu.memory_space<vmem>>, vector<8x1x128xf32>,
    return
  }
  func.func @transform_0(%arg0: i32) -> (i32, i32, i32) {
    %c0_i32 = arith.constant 0 : i32
    %c0_i32_0 = arith.constant 0 : i32
    %c0_i32_1 = arith.constant 0 : i32
    return %arg0, %c0_i32, %c0_i32_0 : i32, i32, i32
  }
  func.func @transform_1(%arg0: i32) -> (i32, i32, i32) {
    %c0_i32 = arith.constant 0 : i32
    %c0_i32_0 = arith.constant 0 : i32
    %c0_i32_1 = arith.constant 0 : i32
    %c0_i32_2 = arith.constant 0 : i32
    return %c0_i32, %c0_i32_0, %c0_i32_1 : i32, i32, i32
  }
  func.func @transform_2(%arg0: i32) -> (i32, i32) {
    %c0_i32 = arith.constant 0 : i32
    %c0_i32_0 = arith.constant 0 : i32
    %c0_i32_1 = arith.constant 0 : i32
    return %c0_i32, %c0_i32_0 : i32, i32
  }
  func.func @transform_3(%arg0: i32) -> (i32, i32, i32) {
    %c0_i32 = arith.constant 0 : i32
    %c0_i32_0 = arith.constant 0 : i32
    %c0_i32_1 = arith.constant 0 : i32
    return %arg0, %c0_i32, %c0_i32_0 : i32, i32, i32
  }
  func.func @transform_4(%arg0: i32) -> (i32, i32, i32) {
    %c0_i32 = arith.constant 0 : i32
    %c0_i32_0 = arith.constant 0 : i32
    %c0_i32_1 = arith.constant 0 : i32
    return %arg0, %c0_i32, %c0_i32_0 : i32, i32, i32
  }
}

</mosaic_0001>

<llo_original>
// kernel: tpu_custom_call.1
$region0: #{tpu_custom_call.1}
  #allocation0 [shape = 'u32[]', space=smem, size = 0x4, offset = 0x4, fixed_abs, tag = 'smem constant byte address 0x4 - core index']
  #allocation1 [shape = 'u32[72,128]{1,0:T(1,128)}', space=vmem, size = 0x9000, scoped, tag = 'internal scratch']
  %s0 = inlined_call_operand.vmem [shape: bf16[8,10,32], index: 0, kind: input, shape index: {}]
  %s1 = inlined_call_operand.vmem [shape: bf16[3,32,128], index: 1, kind: input, shape index: {}]
  %s2 = inlined_call_operand.vmem [shape: f32[1,128], index: 2, kind: input, shape index: {}]
  %s3 = inlined_call_operand.vmem [shape: f32[8,8,3], index: 3, kind: input, shape index: {}]
  %s4 = inlined_call_operand.vmem [shape: f32[8,3,128], index: 4, kind: output, shape index: {}]
  %s5 = sld [smem:[#allocation0]]
  $region26: #{tpu_custom_call.1} parent=0
    _
  %s7 = ssub.s32 1, %s5
  %s8 = scalar_select 0, %s7, %s5
  // Predicated region
  $region2: #{tpu_custom_call.1} parent=0 // pred_check
    _
  $region3: #{tpu_custom_call.1} parent=0 // pred_check_branch
    %10 = sbr.rel (0) target = $region5
  $region4: #{tpu_custom_call.1} parent=0 // pred_region
    _
  $region5: #{tpu_custom_call.1} parent=0 // pred_fallthru
    _
  // Predicated region
  $region6: #{tpu_custom_call.1} parent=0 // pred_check
    _
  $region7: #{tpu_custom_call.1} parent=0 // pred_check_branch
    %12 = sbr.rel (0) target = $region9
  $region8: #{tpu_custom_call.1} parent=0 // pred_region
    _
  $region9: #{tpu_custom_call.1} parent=0 // pred_fallthru
    _
  // Predicated region
  $region10: #{tpu_custom_call.1} parent=0 // pred_check
    _
  $region11: #{tpu_custom_call.1} parent=0 // pred_check_branch
    %14 = sbr.rel (0) target = $region13
  $region12: #{tpu_custom_call.1} parent=0 // pred_region
    _
  $region13: #{tpu_custom_call.1} parent=0 // pred_fallthru
    _
  // Predicated region
  $region14: #{tpu_custom_call.1} parent=0 // pred_check
    _
  $region15: #{tpu_custom_call.1} parent=0 // pred_check_branch
    %16 = sbr.rel (0) target = $region17
  $region16: #{tpu_custom_call.1} parent=0 // pred_region
    _
  $region17: #{tpu_custom_call.1} parent=0 // pred_fallthru
    _
  %v17 = vld [vmem:[%s0] sm:$0xf]
  %v18 = vld [vmem:[%s0 + $0x4] sm:$0x1]
  %v19 = vld [vmem:[%s0 + $0x8] sm:$0xf]
  %v20 = vld [vmem:[%s0 + $0xc] sm:$0x1]
  %v21 = vld [vmem:[%s0 + $0x10] sm:$0xf]
  %v22 = vld [vmem:[%s0 + $0x14] sm:$0x1]
  %v23 = vld [vmem:[%s0 + $0x18] sm:$0xf]
  %v24 = vld [vmem:[%s0 + $0x1c] sm:$0x1]
  %v25 = vld [vmem:[%s0 + $0x20] sm:$0xf]
  %v26 = vld [vmem:[%s0 + $0x24] sm:$0x1]
  %v27 = vld [vmem:[%s0 + $0x28] sm:$0xf]
  %v28 = vld [vmem:[%s0 + $0x2c] sm:$0x1]
  %v29 = vld [vmem:[%s0 + $0x30] sm:$0xf]
  %v30 = vld [vmem:[%s0 + $0x34] sm:$0x1]
  %v31 = vld [vmem:[%s0 + $0x38] sm:$0xf]
  %v32 = vld [vmem:[%s0 + $0x3c] sm:$0x1]
  %v33 = vunpack.c.l.bf16 %v17
  %v34 = vunpack.c.l.bf16 %v18
  %v35 = vunpack.c.l.bf16 %v19
  %v36 = vunpack.c.l.bf16 %v20
  %v37 = vunpack.c.l.bf16 %v21
  %v38 = vunpack.c.l.bf16 %v22
  %v39 = vunpack.c.l.bf16 %v23
  %v40 = vunpack.c.l.bf16 %v24
  %v41 = vunpack.c.l.bf16 %v25
  %v42 = vunpack.c.l.bf16 %v26
  %v43 = vunpack.c.l.bf16 %v27
  %v44 = vunpack.c.l.bf16 %v28
  %v45 = vunpack.c.l.bf16 %v29
  %v46 = vunpack.c.l.bf16 %v30
  %v47 = vunpack.c.l.bf16 %v31
  %v48 = vunpack.c.l.bf16 %v32
  %v49 = vld [vmem:[%s1] sm:$0xf]
  %v50 = vld [vmem:[%s1 + $0x4] sm:$0xf]
  %v51 = vld [vmem:[%s1 + $0x8] sm:$0xf]
  %v52 = vld [vmem:[%s1 + $0xc] sm:$0xf]
  %v53 = vld [vmem:[%s1 + $0x10] sm:$0xf]
  %v54 = vld [vmem:[%s1 + $0x14] sm:$0xf]
  %v55 = vld [vmem:[%s1 + $0x18] sm:$0xf]
  %v56 = vld [vmem:[%s1 + $0x1c] sm:$0xf]
  %v57 = vld [vmem:[%s1 + $0x20] sm:$0xf]
  %v58 = vld [vmem:[%s1 + $0x24] sm:$0xf]
  %v59 = vld [vmem:[%s1 + $0x28] sm:$0xf]
  %v60 = vld [vmem:[%s1 + $0x2c] sm:$0xf]
  %v61 = vunpack.c.l.bf16 %v49
  %v62 = vunpack.c.l.bf16 %v50
  %v63 = vunpack.c.l.bf16 %v51
  %v64 = vunpack.c.l.bf16 %v52
  %v65 = vunpack.c.l.bf16 %v53
  %v66 = vunpack.c.l.bf16 %v54
  %v67 = vunpack.c.l.bf16 %v55
  %v68 = vunpack.c.l.bf16 %v56
  %v69 = vunpack.c.l.bf16 %v57
  %v70 = vunpack.c.l.bf16 %v58
  %v71 = vunpack.c.l.bf16 %v59
  %v72 = vunpack.c.l.bf16 %v60
  %vm89 = vcmask 1046528
  %v90 = vrot.slane %v33, 1
  %v91 = vrot.slane %v34, 1
  %v92 = vsel %vm89, %v90, %v91
  %v93 = vrot.slane %v35, 1
  %v94 = vrot.slane %v36, 1
  %v95 = vsel %vm89, %v93, %v94
  %v96 = vrot.slane %v37, 1
  %v97 = vrot.slane %v38, 1
  %v98 = vsel %vm89, %v96, %v97
  %v99 = vrot.slane %v39, 1
  %v100 = vrot.slane %v40, 1
  %v101 = vsel %vm89, %v99, %v100
  %v102 = vrot.slane %v41, 1
  %v103 = vrot.slane %v42, 1
  %v104 = vsel %vm89, %v102, %v103
  %v105 = vrot.slane %v43, 1
  %v106 = vrot.slane %v44, 1
  %v107 = vsel %vm89, %v105, %v106
  %v108 = vrot.slane %v45, 1
  %v109 = vrot.slane %v46, 1
  %v110 = vsel %vm89, %v108, %v109
  %v111 = vrot.slane %v47, 1
  %v112 = vrot.slane %v48, 1
  %v113 = vsel %vm89, %v111, %v112
  %vm114 = vcmask 261120
  %v115 = vsel %vm114, %v92, 0
  %v117 = vsel %vm114, %v95, 0
  %v119 = vsel %vm114, %v98, 0
  %v121 = vsel %vm114, %v101, 0
  %v123 = vsel %vm114, %v104, 0
  %v125 = vsel %vm114, %v107, 0
  %v127 = vsel %vm114, %v110, 0
  %v129 = vsel %vm114, %v113, 0
  %131 = vmatpush.msra.mxu0 0.0
  %132 = vmatpush.msra.mxu0 0.0
  %133 = vmatpush.msra.mxu0 0.0
  %134 = vmatpush.msra.mxu0 0.0
  %135 = vmatpush.msra.mxu0 0.0
  %136 = vmatpush.msra.mxu0 0.0
  %137 = vmatpush.msra.mxu0 0.0
  %138 = vmatpush.msra.mxu0 0.0
  %139 = vmatpush.msra.mxu0 0.0
  %140 = vmatpush.msra.mxu0 0.0
  %141 = vmatpush.msra.mxu0 0.0
  %142 = vmatpush.msra.mxu0 0.0
  %143 = vmatpush.msra.mxu0 %v68
  %144 = vmatpush.msra.mxu0 %v67
  %145 = vmatpush.msra.mxu0 %v66
  %146 = vmatpush.msra.mxu0 %v65
  %147 = vmatmul.f32.gmra.mxu0 %v115
  %v148 = vpop.f32.mrf.mxu0
  %v149 = vadd.f32 0.0, %v148
  %150 = vmatmul.f32.gmra.mxu0 %v117
  %v151 = vpop.f32.mrf.mxu0
  %v152 = vadd.f32 0.0, %v151
  %153 = vmatmul.f32.gmra.mxu0 %v119
  %v154 = vpop.f32.mrf.mxu0
  %v155 = vadd.f32 0.0, %v154
  %156 = vmatmul.f32.gmra.mxu0 %v121
  %v157 = vpop.f32.mrf.mxu0
  %v158 = vadd.f32 0.0, %v157
  %159 = vmatmul.f32.gmra.mxu0 %v123
  %v160 = vpop.f32.mrf.mxu0
  %v161 = vadd.f32 0.0, %v160
  %162 = vmatmul.f32.gmra.mxu0 %v125
  %v163 = vpop.f32.mrf.mxu0
  %v164 = vadd.f32 0.0, %v163
  %165 = vmatmul.f32.gmra.mxu0 %v127
  %v166 = vpop.f32.mrf.mxu0
  %v167 = vadd.f32 0.0, %v166
  %168 = vmatmul.f32.gmra.mxu0 %v129
  %v169 = vpop.f32.mrf.mxu0
  %v170 = vadd.f32 0.0, %v169
  %171 = vdwg.mxu0
  %v172 = vsel %vm114, %v33, 0
  %v174 = vsel %vm114, %v35, 0
  %v176 = vsel %vm114, %v37, 0
  %v178 = vsel %vm114, %v39, 0
  %v180 = vsel %vm114, %v41, 0
  %v182 = vsel %vm114, %v43, 0
  %v184 = vsel %vm114, %v45, 0
  %v186 = vsel %vm114, %v47, 0
  %188 = vmatpush.msra.mxu0 0.0
  %189 = vmatpush.msra.mxu0 0.0
  %190 = vmatpush.msra.mxu0 0.0
  %191 = vmatpush.msra.mxu0 0.0
  %192 = vmatpush.msra.mxu0 0.0
  %193 = vmatpush.msra.mxu0 0.0
  %194 = vmatpush.msra.mxu0 0.0
  %195 = vmatpush.msra.mxu0 0.0
  %196 = vmatpush.msra.mxu0 0.0
  %197 = vmatpush.msra.mxu0 0.0
  %198 = vmatpush.msra.mxu0 0.0
  %199 = vmatpush.msra.mxu0 0.0
  %200 = vmatpush.msra.mxu0 %v64
  %201 = vmatpush.msra.mxu0 %v63
  %202 = vmatpush.msra.mxu0 %v62
  %203 = vmatpush.msra.mxu0 %v61
  %204 = vmatmul.f32.gmra.mxu0 %v172
  %v205 = vpop.f32.mrf.mxu0
  %v206 = vadd.f32 %v149, %v205
  %207 = vmatmul.f32.gmra.mxu0 %v174
  %v208 = vpop.f32.mrf.mxu0
  %v209 = vadd.f32 %v152, %v208
  %210 = vmatmul.f32.gmra.mxu0 %v176
  %v211 = vpop.f32.mrf.mxu0
  %v212 = vadd.f32 %v155, %v211
  %213 = vmatmul.f32.gmra.mxu0 %v178
  %v214 = vpop.f32.mrf.mxu0
  %v215 = vadd.f32 %v158, %v214
  %216 = vmatmul.f32.gmra.mxu0 %v180
  %v217 = vpop.f32.mrf.mxu0
  %v218 = vadd.f32 %v161, %v217
  %219 = vmatmul.f32.gmra.mxu0 %v182
  %v220 = vpop.f32.mrf.mxu0
  %v221 = vadd.f32 %v164, %v220
  %222 = vmatmul.f32.gmra.mxu0 %v184
  %v223 = vpop.f32.mrf.mxu0
  %v224 = vadd.f32 %v167, %v223
  %225 = vmatmul.f32.gmra.mxu0 %v186
  %v226 = vpop.f32.mrf.mxu0
  %v227 = vadd.f32 %v170, %v226
  %228 = vdwg.mxu0
  %vm229 = vcmask 1045504
  %v230 = vrot.slane %v33, 2
  %v231 = vrot.slane %v34, 2
  %v232 = vsel %vm229, %v230, %v231
  %v233 = vrot.slane %v35, 2
  %v234 = vrot.slane %v36, 2
  %v235 = vsel %vm229, %v233, %v234
  %v236 = vrot.slane %v37, 2
  %v237 = vrot.slane %v38, 2
  %v238 = vsel %vm229, %v236, %v237
  %v239 = vrot.slane %v39, 2
  %v240 = vrot.slane %v40, 2
  %v241 = vsel %vm229, %v239, %v240
  %v242 = vrot.slane %v41, 2
  %v243 = vrot.slane %v42, 2
  %v244 = vsel %vm229, %v242, %v243
  %v245 = vrot.slane %v43, 2
  %v246 = vrot.slane %v44, 2
  %v247 = vsel %vm229, %v245, %v246
  %v248 = vrot.slane %v45, 2
  %v249 = vrot.slane %v46, 2
  %v250 = vsel %vm229, %v248, %v249
  %v251 = vrot.slane %v47, 2
  %v252 = vrot.slane %v48, 2
  %v253 = vsel %vm229, %v251, %v252
  %v254 = vsel %vm114, %v232, 0
  %v256 = vsel %vm114, %v235, 0
  %v258 = vsel %vm114, %v238, 0
  %v260 = vsel %vm114, %v241, 0
  %v262 = vsel %vm114, %v244, 0
  %v264 = vsel %vm114, %v247, 0
  %v266 = vsel %vm114, %v250, 0
  %v268 = vsel %vm114, %v253, 0
  %270 = vmatpush.msra.mxu0 0.0
  %271 = vmatpush.msra.mxu0 0.0
  %272 = vmatpush.msra.mxu0 0.0
  %273 = vmatpush.msra.mxu0 0.0
  %274 = vmatpush.msra.mxu0 0.0
  %275 = vmatpush.msra.mxu0 0.0
  %276 = vmatpush.msra.mxu0 0.0
  %277 = vmatpush.msra.mxu0 0.0
  %278 = vmatpush.msra.mxu0 0.0
  %279 = vmatpush.msra.mxu0 0.0
  %280 = vmatpush.msra.mxu0 0.0
  %281 = vmatpush.msra.mxu0 0.0
  %282 = vmatpush.msra.mxu0 %v72
  %283 = vmatpush.msra.mxu0 %v71
  %284 = vmatpush.msra.mxu0 %v70
  %285 = vmatpush.msra.mxu0 %v69
  %286 = vmatmul.f32.gmra.mxu0 %v254
  %v287 = vpop.f32.mrf.mxu0
  %v288 = vadd.f32 0.0, %v287
  %289 = vmatmul.f32.gmra.mxu0 %v256
  %v290 = vpop.f32.mrf.mxu0
  %v291 = vadd.f32 0.0, %v290
  %292 = vmatmul.f32.gmra.mxu0 %v258
  %v293 = vpop.f32.mrf.mxu0
  %v294 = vadd.f32 0.0, %v293
  %295 = vmatmul.f32.gmra.mxu0 %v260
  %v296 = vpop.f32.mrf.mxu0
  %v297 = vadd.f32 0.0, %v296
  %298 = vmatmul.f32.gmra.mxu0 %v262
  %v299 = vpop.f32.mrf.mxu0
  %v300 = vadd.f32 0.0, %v299
  %301 = vmatmul.f32.gmra.mxu0 %v264
  %v302 = vpop.f32.mrf.mxu0
  %v303 = vadd.f32 0.0, %v302
  %304 = vmatmul.f32.gmra.mxu0 %v266
  %v305 = vpop.f32.mrf.mxu0
  %v306 = vadd.f32 0.0, %v305
  %307 = vmatmul.f32.gmra.mxu0 %v268
  %v308 = vpop.f32.mrf.mxu0
  %v309 = vadd.f32 0.0, %v308
  %310 = vdwg.mxu0
  %v311 = vadd.f32 %v206, %v288
  %v312 = vadd.f32 %v209, %v291
  %v313 = vadd.f32 %v212, %v294
  %v314 = vadd.f32 %v215, %v297
  %v315 = vadd.f32 %v218, %v300
  %v316 = vadd.f32 %v221, %v303
  %v317 = vadd.f32 %v224, %v306
  %v318 = vadd.f32 %v227, %v309
  %v319 = vld [vmem:[%s2] sm:$0x1]
  %v320 = vld [vmem:[%s3] sm:$0xff]
  %v321 = vld [vmem:[%s3 + $0x8] sm:$0xff]
  %v322 = vld [vmem:[%s3 + $0x10] sm:$0xff]
  %v323 = vld [vmem:[%s3 + $0x18] sm:$0xff]
  %v324 = vld [vmem:[%s3 + $0x20] sm:$0xff]
  %v325 = vld [vmem:[%s3 + $0x28] sm:$0xff]
  %v326 = vld [vmem:[%s3 + $0x30] sm:$0xff]
  %v327 = vld [vmem:[%s3 + $0x38] sm:$0xff]
  %329 = vset.pattern.permute.xlu0 0
  %330 = vperm.xlu0 %329, %v320
  %v331 = vpop.permute.xlu0 %330
  %334 = vset.pattern.permute.xlu0 0
  %335 = vperm.xlu0 %334, %v321
  %v336 = vpop.permute.xlu0 %335
  %339 = vset.pattern.permute.xlu0 0
  %340 = vperm.xlu0 %339, %v322
  %v341 = vpop.permute.xlu0 %340
  %344 = vset.pattern.permute.xlu0 0
  %345 = vperm.xlu0 %344, %v323
  %v346 = vpop.permute.xlu0 %345
  %349 = vset.pattern.permute.xlu0 0
  %350 = vperm.xlu0 %349, %v324
  %v351 = vpop.permute.xlu0 %350
  %354 = vset.pattern.permute.xlu0 0
  %355 = vperm.xlu0 %354, %v325
  %v356 = vpop.permute.xlu0 %355
  %359 = vset.pattern.permute.xlu0 0
  %360 = vperm.xlu0 %359, %v326
  %v361 = vpop.permute.xlu0 %360
  %364 = vset.pattern.permute.xlu0 0
  %365 = vperm.xlu0 %364, %v327
  %v366 = vpop.permute.xlu0 %365
  %v368 = vadd.f32 %v311, %v331
  %v369 = vadd.f32 %v312, %v336
  %v370 = vadd.f32 %v313, %v341
  %v371 = vadd.f32 %v314, %v346
  %v372 = vadd.f32 %v315, %v351
  %v373 = vadd.f32 %v316, %v356
  %v374 = vadd.f32 %v317, %v361
  %v375 = vadd.f32 %v318, %v366
  %v376 = vrot.slane %v368, 4
  %v377 = vmax.f32 %v368, %v376
  %v378 = vrot.slane %v377, 2
  %v379 = vmax.f32 %v377, %v378
  %v380 = vrot.slane %v379, 1
  %v381 = vmax.f32 %v379, %v380
  %v382 = vrot.slane %v369, 4
  %v383 = vmax.f32 %v369, %v382
  %v384 = vrot.slane %v383, 2
  %v385 = vmax.f32 %v383, %v384
  %v386 = vrot.slane %v385, 1
  %v387 = vmax.f32 %v385, %v386
  %v388 = vrot.slane %v370, 4
  %v389 = vmax.f32 %v370, %v388
  %v390 = vrot.slane %v389, 2
  %v391 = vmax.f32 %v389, %v390
  %v392 = vrot.slane %v391, 1
  %v393 = vmax.f32 %v391, %v392
  %v394 = vrot.slane %v371, 4
  %v395 = vmax.f32 %v371, %v394
  %v396 = vrot.slane %v395, 2
  %v397 = vmax.f32 %v395, %v396
  %v398 = vrot.slane %v397, 1
  %v399 = vmax.f32 %v397, %v398
  %v400 = vrot.slane %v372, 4
  %v401 = vmax.f32 %v372, %v400
  %v402 = vrot.slane %v401, 2
  %v403 = vmax.f32 %v401, %v402
  %v404 = vrot.slane %v403, 1
  %v405 = vmax.f32 %v403, %v404
  %v406 = vrot.slane %v373, 4
  %v407 = vmax.f32 %v373, %v406
  %v408 = vrot.slane %v407, 2
  %v409 = vmax.f32 %v407, %v408
  %v410 = vrot.slane %v409, 1
  %v411 = vmax.f32 %v409, %v410
  %v412 = vrot.slane %v374, 4
  %v413 = vmax.f32 %v374, %v412
  %v414 = vrot.slane %v413, 2
  %v415 = vmax.f32 %v413, %v414
  %v416 = vrot.slane %v415, 1
  %v417 = vmax.f32 %v415, %v416
  %v418 = vrot.slane %v375, 4
  %v419 = vmax.f32 %v375, %v418
  %v420 = vrot.slane %v419, 2
  %v421 = vmax.f32 %v419, %v420
  %v422 = vrot.slane %v421, 1
  %v423 = vmax.f32 %v421, %v422
  %v425 = vperm.slane %v319, 0
  %v427 = vadd.f32 %v381, %v425
  %v428 = vadd.f32 %v387, %v425
  %v429 = vadd.f32 %v393, %v425
  %v430 = vadd.f32 %v399, %v425
  %v431 = vadd.f32 %v405, %v425
  %v432 = vadd.f32 %v411, %v425
  %v433 = vadd.f32 %v417, %v425
  %v434 = vadd.f32 %v423, %v425
  %v435 = vsub.f32 %v427, 100.0
  %v436 = vsub.f32 %v428, 100.0
  %v437 = vsub.f32 %v429, 100.0
  %v438 = vsub.f32 %v430, 100.0
  %v439 = vsub.f32 %v431, 100.0
  %v440 = vsub.f32 %v432, 100.0
  %v441 = vsub.f32 %v433, 100.0
  %v442 = vsub.f32 %v434, 100.0
  %v443 = vmax.f32 %v435, 0.0
  %v444 = vmax.f32 %v436, 0.0
  %v445 = vmax.f32 %v437, 0.0
  %v446 = vmax.f32 %v438, 0.0
  %v447 = vmax.f32 %v439, 0.0
  %v448 = vmax.f32 %v440, 0.0
  %v449 = vmax.f32 %v441, 0.0
  %v450 = vmax.f32 %v442, 0.0
  %451 = vst [vmem:[%s4] sm:$0x1] %v443
  %452 = vst [vmem:[%s4 + $0x4] sm:$0x1] %v444
  %453 = vst [vmem:[%s4 + $0x8] sm:$0x1] %v445
  %454 = vst [vmem:[%s4 + $0xc] sm:$0x1] %v446
  %455 = vst [vmem:[%s4 + $0x10] sm:$0x1] %v447
  %456 = vst [vmem:[%s4 + $0x14] sm:$0x1] %v448
  %457 = vst [vmem:[%s4 + $0x18] sm:$0x1] %v449
  %458 = vst [vmem:[%s4 + $0x1c] sm:$0x1] %v450
  %459 = vset.pattern.permute.xlu0 1
  %460 = vperm.xlu0 %459, %v320
  %v461 = vpop.permute.xlu0 %460
  %463 = vset.pattern.permute.xlu0 1
  %464 = vperm.xlu0 %463, %v321
  %v465 = vpop.permute.xlu0 %464
  %467 = vset.pattern.permute.xlu0 1
  %468 = vperm.xlu0 %467, %v322
  %v469 = vpop.permute.xlu0 %468
  %471 = vset.pattern.permute.xlu0 1
  %472 = vperm.xlu0 %471, %v323
  %v473 = vpop.permute.xlu0 %472
  %475 = vset.pattern.permute.xlu0 1
  %476 = vperm.xlu0 %475, %v324
  %v477 = vpop.permute.xlu0 %476
  %479 = vset.pattern.permute.xlu0 1
  %480 = vperm.xlu0 %479, %v325
  %v481 = vpop.permute.xlu0 %480
  %483 = vset.pattern.permute.xlu0 1
  %484 = vperm.xlu0 %483, %v326
  %v485 = vpop.permute.xlu0 %484
  %487 = vset.pattern.permute.xlu0 1
  %488 = vperm.xlu0 %487, %v327
  %v489 = vpop.permute.xlu0 %488
  %v491 = vadd.f32 %v311, %v461
  %v492 = vadd.f32 %v312, %v465
  %v493 = vadd.f32 %v313, %v469
  %v494 = vadd.f32 %v314, %v473
  %v495 = vadd.f32 %v315, %v477
  %v496 = vadd.f32 %v316, %v481
  %v497 = vadd.f32 %v317, %v485
  %v498 = vadd.f32 %v318, %v489
  %v499 = vrot.slane %v491, 4
  %v500 = vmax.f32 %v491, %v499
  %v501 = vrot.slane %v500, 2
  %v502 = vmax.f32 %v500, %v501
  %v503 = vrot.slane %v502, 1
  %v504 = vmax.f32 %v502, %v503
  %v505 = vrot.slane %v492, 4
  %v506 = vmax.f32 %v492, %v505
  %v507 = vrot.slane %v506, 2
  %v508 = vmax.f32 %v506, %v507
  %v509 = vrot.slane %v508, 1
  %v510 = vmax.f32 %v508, %v509
  %v511 = vrot.slane %v493, 4
  %v512 = vmax.f32 %v493, %v511
  %v513 = vrot.slane %v512, 2
  %v514 = vmax.f32 %v512, %v513
  %v515 = vrot.slane %v514, 1
  %v516 = vmax.f32 %v514, %v515
  %v517 = vrot.slane %v494, 4
  %v518 = vmax.f32 %v494, %v517
  %v519 = vrot.slane %v518, 2
  %v520 = vmax.f32 %v518, %v519
  %v521 = vrot.slane %v520, 1
  %v522 = vmax.f32 %v520, %v521
  %v523 = vrot.slane %v495, 4
  %v524 = vmax.f32 %v495, %v523
  %v525 = vrot.slane %v524, 2
  %v526 = vmax.f32 %v524, %v525
  %v527 = vrot.slane %v526, 1
  %v528 = vmax.f32 %v526, %v527
  %v529 = vrot.slane %v496, 4
  %v530 = vmax.f32 %v496, %v529
  %v531 = vrot.slane %v530, 2
  %v532 = vmax.f32 %v530, %v531
  %v533 = vrot.slane %v532, 1
  %v534 = vmax.f32 %v532, %v533
  %v535 = vrot.slane %v497, 4
  %v536 = vmax.f32 %v497, %v535
  %v537 = vrot.slane %v536, 2
  %v538 = vmax.f32 %v536, %v537
  %v539 = vrot.slane %v538, 1
  %v540 = vmax.f32 %v538, %v539
  %v541 = vrot.slane %v498, 4
  %v542 = vmax.f32 %v498, %v541
  %v543 = vrot.slane %v542, 2
  %v544 = vmax.f32 %v542, %v543
  %v545 = vrot.slane %v544, 1
  %v546 = vmax.f32 %v544, %v545
  %v547 = vadd.f32 %v504, %v425
  %v548 = vadd.f32 %v510, %v425
  %v549 = vadd.f32 %v516, %v425
  %v550 = vadd.f32 %v522, %v425
  %v551 = vadd.f32 %v528, %v425
  %v552 = vadd.f32 %v534, %v425
  %v553 = vadd.f32 %v540, %v425
  %v554 = vadd.f32 %v546, %v425
  %v555 = vsub.f32 %v547, 100.0
  %v556 = vsub.f32 %v548, 100.0
  %v557 = vsub.f32 %v549, 100.0
  %v558 = vsub.f32 %v550, 100.0
  %v559 = vsub.f32 %v551, 100.0
  %v560 = vsub.f32 %v552, 100.0
  %v561 = vsub.f32 %v553, 100.0
  %v562 = vsub.f32 %v554, 100.0
  %v563 = vmax.f32 %v555, 0.0
  %v564 = vmax.f32 %v556, 0.0
  %v565 = vmax.f32 %v557, 0.0
  %v566 = vmax.f32 %v558, 0.0
  %v567 = vmax.f32 %v559, 0.0
  %v568 = vmax.f32 %v560, 0.0
  %v569 = vmax.f32 %v561, 0.0
  %v570 = vmax.f32 %v562, 0.0
  %571 = vst [vmem:[%s4 + $0x1] sm:$0x1] %v563
  %572 = vst [vmem:[%s4 + $0x5] sm:$0x1] %v564
  %573 = vst [vmem:[%s4 + $0x9] sm:$0x1] %v565
  %574 = vst [vmem:[%s4 + $0xd] sm:$0x1] %v566
  %575 = vst [vmem:[%s4 + $0x11] sm:$0x1] %v567
  %576 = vst [vmem:[%s4 + $0x15] sm:$0x1] %v568
  %577 = vst [vmem:[%s4 + $0x19] sm:$0x1] %v569
  %578 = vst [vmem:[%s4 + $0x1d] sm:$0x1] %v570
  %579 = vset.pattern.permute.xlu0 2
  %580 = vperm.xlu0 %579, %v320
  %v581 = vpop.permute.xlu0 %580
  %583 = vset.pattern.permute.xlu0 2
  %584 = vperm.xlu0 %583, %v321
  %v585 = vpop.permute.xlu0 %584
  %587 = vset.pattern.permute.xlu0 2
  %588 = vperm.xlu0 %587, %v322
  %v589 = vpop.permute.xlu0 %588
  %591 = vset.pattern.permute.xlu0 2
  %592 = vperm.xlu0 %591, %v323
  %v593 = vpop.permute.xlu0 %592
  %595 = vset.pattern.permute.xlu0 2
  %596 = vperm.xlu0 %595, %v324
  %v597 = vpop.permute.xlu0 %596
  %599 = vset.pattern.permute.xlu0 2
  %600 = vperm.xlu0 %599, %v325
  %v601 = vpop.permute.xlu0 %600
  %603 = vset.pattern.permute.xlu0 2
  %604 = vperm.xlu0 %603, %v326
  %v605 = vpop.permute.xlu0 %604
  %607 = vset.pattern.permute.xlu0 2
  %608 = vperm.xlu0 %607, %v327
  %v609 = vpop.permute.xlu0 %608
  %v611 = vadd.f32 %v311, %v581
  %v612 = vadd.f32 %v312, %v585
  %v613 = vadd.f32 %v313, %v589
  %v614 = vadd.f32 %v314, %v593
  %v615 = vadd.f32 %v315, %v597
  %v616 = vadd.f32 %v316, %v601
  %v617 = vadd.f32 %v317, %v605
  %v618 = vadd.f32 %v318, %v609
  %v619 = vrot.slane %v611, 4
  %v620 = vmax.f32 %v611, %v619
  %v621 = vrot.slane %v620, 2
  %v622 = vmax.f32 %v620, %v621
  %v623 = vrot.slane %v622, 1
  %v624 = vmax.f32 %v622, %v623
  %v625 = vrot.slane %v612, 4
  %v626 = vmax.f32 %v612, %v625
  %v627 = vrot.slane %v626, 2
  %v628 = vmax.f32 %v626, %v627
  %v629 = vrot.slane %v628, 1
  %v630 = vmax.f32 %v628, %v629
  %v631 = vrot.slane %v613, 4
  %v632 = vmax.f32 %v613, %v631
  %v633 = vrot.slane %v632, 2
  %v634 = vmax.f32 %v632, %v633
  %v635 = vrot.slane %v634, 1
  %v636 = vmax.f32 %v634, %v635
  %v637 = vrot.slane %v614, 4
  %v638 = vmax.f32 %v614, %v637
  %v639 = vrot.slane %v638, 2
  %v640 = vmax.f32 %v638, %v639
  %v641 = vrot.slane %v640, 1
  %v642 = vmax.f32 %v640, %v641
  %v643 = vrot.slane %v615, 4
  %v644 = vmax.f32 %v615, %v643
  %v645 = vrot.slane %v644, 2
  %v646 = vmax.f32 %v644, %v645
  %v647 = vrot.slane %v646, 1
  %v648 = vmax.f32 %v646, %v647
  %v649 = vrot.slane %v616, 4
  %v650 = vmax.f32 %v616, %v649
  %v651 = vrot.slane %v650, 2
  %v652 = vmax.f32 %v650, %v651
  %v653 = vrot.slane %v652, 1
  %v654 = vmax.f32 %v652, %v653
  %v655 = vrot.slane %v617, 4
  %v656 = vmax.f32 %v617, %v655
  %v657 = vrot.slane %v656, 2
  %v658 = vmax.f32 %v656, %v657
  %v659 = vrot.slane %v658, 1
  %v660 = vmax.f32 %v658, %v659
  %v661 = vrot.slane %v618, 4
  %v662 = vmax.f32 %v618, %v661
  %v663 = vrot.slane %v662, 2
  %v664 = vmax.f32 %v662, %v663
  %v665 = vrot.slane %v664, 1
  %v666 = vmax.f32 %v664, %v665
  %v667 = vadd.f32 %v624, %v425
  %v668 = vadd.f32 %v630, %v425
  %v669 = vadd.f32 %v636, %v425
  %v670 = vadd.f32 %v642, %v425
  %v671 = vadd.f32 %v648, %v425
  %v672 = vadd.f32 %v654, %v425
  %v673 = vadd.f32 %v660, %v425
  %v674 = vadd.f32 %v666, %v425
  %v675 = vsub.f32 %v667, 100.0
  %v676 = vsub.f32 %v668, 100.0
  %v677 = vsub.f32 %v669, 100.0
  %v678 = vsub.f32 %v670, 100.0
  %v679 = vsub.f32 %v671, 100.0
  %v680 = vsub.f32 %v672, 100.0
  %v681 = vsub.f32 %v673, 100.0
  %v682 = vsub.f32 %v674, 100.0
  %v683 = vmax.f32 %v675, 0.0
  %v684 = vmax.f32 %v676, 0.0
  %v685 = vmax.f32 %v677, 0.0
  %v686 = vmax.f32 %v678, 0.0
  %v687 = vmax.f32 %v679, 0.0
  %v688 = vmax.f32 %v680, 0.0
  %v689 = vmax.f32 %v681, 0.0
  %v690 = vmax.f32 %v682, 0.0
  %691 = vst [vmem:[%s4 + $0x2] sm:$0x1] %v683
  %692 = vst [vmem:[%s4 + $0x6] sm:$0x1] %v684
  %693 = vst [vmem:[%s4 + $0xa] sm:$0x1] %v685
  %694 = vst [vmem:[%s4 + $0xe] sm:$0x1] %v686
  %695 = vst [vmem:[%s4 + $0x12] sm:$0x1] %v687
  %696 = vst [vmem:[%s4 + $0x16] sm:$0x1] %v688
  %697 = vst [vmem:[%s4 + $0x1a] sm:$0x1] %v689
  %698 = vst [vmem:[%s4 + $0x1e] sm:$0x1] %v690
  // Predicated region
  $region18: #{tpu_custom_call.1} parent=0 // pred_check
    _
  $region19: #{tpu_custom_call.1} parent=0 // pred_check_branch
    %700 = sbr.rel (0) target = $region21
  $region20: #{tpu_custom_call.1} parent=0 // pred_region
    _
  $region21: #{tpu_custom_call.1} parent=0 // pred_fallthru
    _
  // Predicated region
  $region22: #{tpu_custom_call.1} parent=0 // pred_check
    _
  $region23: #{tpu_custom_call.1} parent=0 // pred_check_branch
    %702 = sbr.rel (0) target = $region25
  $region24: #{tpu_custom_call.1} parent=0 // pred_region
    _
  $region25: #{tpu_custom_call.1} parent=0 // pred_fallthru
    _

</llo_original>
